<compile_context>
chip_gen: v5e
topology: v5e:2x2
jax: 0.10.0
libtpu: 0.0.40
codegen_flags: <defaults>
</compile_context>

<pallas_src>
import math

import jax
import jax.numpy as jnp
from jax.experimental import pallas as pl
from jax.experimental.pallas import tpu as pltpu


def _embed_kernel(x_ref, h_ref, w_ref, pe_ref, o_ref):
    """One (sequence-tile, batch) grid step.

    x_ref : (TL, C)    bf16 sequence tile (batch squeezed)
    h_ref : (2, C)     bf16 circular halo rows [x[start-1 mod L], x[start+TL mod L]]
    w_ref : (C, 3*Dp)  bf16 packed weights [W0 | W1 | W2], Dp % 128 == 0
    pe_ref: (TL, D)    f32 positional-embedding tile (reused across batch steps)
    o_ref : (TL, D)    output tile
    """
    TL = x_ref.shape[0]
    D = o_ref.shape[-1]
    Dp = w_ref.shape[-1] // 3

    # One fused MXU pass on the aligned tile: z = [x@W0 | x@W1 | x@W2]  (TL, 3*Dp) f32.
    z = jnp.dot(x_ref[...], w_ref[...], preferred_element_type=jnp.float32)
    # Tiny MXU pass for the two circular-wrap halo rows: (2, 3*Dp) f32.
    hz = jnp.dot(h_ref[...], w_ref[...], preferred_element_type=jnp.float32)

    z0 = z[:, :Dp]           # x[t] @ W0
    z1 = z[:, Dp:2 * Dp]     # x[t] @ W1
    z2 = z[:, 2 * Dp:]       # x[t] @ W2

    # y[t] = x[t-1]@W0 + x[t]@W1 + x[t+1]@W2 (circular): shift the W0/W2 terms by one
    # row on the XLU (no scratch, no relayout copies) and patch the two wrap rows
    # with the halo contributions.
    z0s = pltpu.roll(z0, shift=1, axis=0)        # row t <- z0[t-1]
    z2s = pltpu.roll(z2, shift=TL - 1, axis=0)   # row t <- z2[t+1]
    row = jax.lax.broadcasted_iota(jnp.int32, (TL, Dp), 0)
    z0s = jnp.where(row == 0, hz[0:1, :Dp], z0s)            # x[start-1 mod L] @ W0
    z2s = jnp.where(row == TL - 1, hz[1:2, 2 * Dp:], z2s)   # x[start+TL mod L] @ W2

    y = (z0s + z1 + z2s)[:, :D] + pe_ref[...]
    o_ref[...] = y.astype(o_ref.dtype)


def _choose_tl(L, tl_max, per_row_bytes, budget_bytes=40 << 20):
    """Largest multiple-of-8 divisor of L that is <= tl_max and fits the VMEM budget."""
    cap = min(int(tl_max), max(8, budget_bytes // max(per_row_bytes, 1)), L)
    t = cap - (cap % 8)
    while t >= 8:
        if L % t == 0:
            return t
        t -= 8
    # TODO(synk): pad L or emit a ragged last tile; a single full-length tile can blow
    # VMEM for very long sequences whose length has no small multiple-of-8 divisor.
    return L


def data_embedding_wo_temp(x, conv_weight, pe, x_mark=None, *, tl_max=1024,
                           out_dtype=None):
    """x: [B, L, C]. conv_weight: [d_model, c_in, 3] (PyTorch Conv1d layout).
    pe: [max_len, d_model]. x_mark is unused (wo_temp). Returns [B, L, d_model]."""
    del x_mark  # DataEmbedding_wo_temp ignores temporal marks.
    B, L, C = x.shape
    D = conv_weight.shape[0]
    assert conv_weight.shape == (D, C, 3)
    assert L <= pe.shape[0], "sequence length exceeds positional-embedding max_len"
    out_dtype = x.dtype if out_dtype is None else jnp.dtype(out_dtype)
    out_isz = jnp.dtype(out_dtype).itemsize

    # Lane-dense compute width (multiple of 128); the output itself is written at its
    # natural width D (masked final lane group if D % 128 != 0 -- no post-kernel slice).
    Dp = max(128, ((D + 127) // 128) * 128)

    # --- parameter repack (tiny; constant-folds under jit / can be hoisted once) ---
    w3 = jnp.transpose(conv_weight, (2, 1, 0)).astype(jnp.float32)       # (3, C, D)
    if Dp != D:
        w3 = jnp.pad(w3, ((0, 0), (0, 0), (0, Dp - D)))
    wcat = jnp.concatenate([w3[0], w3[1], w3[2]], axis=1).astype(jnp.bfloat16)  # (C, 3Dp)

    pe_l = pe[:L].astype(jnp.float32)                                    # (L, D)

    # --- sequence tiling (VMEM-budgeted; safe for v7x's 64 MiB) ---
    per_row_bytes = (2 * C * 2) + (2 * D * 4) + (2 * D * out_isz) + (2 * 3 * Dp * 4)
    TL = _choose_tl(L, tl_max, per_row_bytes)
    NT = L // TL
    # v7x has 2 TensorCores: make sure the parallel grid has >= 2 steps when possible.
    if B * NT < 2:
        half = TL // 2
        if half >= 8 and half % 8 == 0 and L % half == 0:
            TL, NT = half, L // half

    # bf16 MXU operands (halves x-side DMA; accumulation stays f32 in-kernel).
    x_bf = x.astype(jnp.bfloat16)

    # Tiny circular-wrap halo: halo[b, i] = [x[b, (i*TL-1) % L], x[b, (i*TL+TL) % L]]
    starts = jnp.arange(NT, dtype=jnp.int32) * TL
    idx = jnp.stack([(starts - 1) % L, (starts + TL) % L], axis=1)       # (NT, 2)
    halo = x_bf[:, idx]                                                  # (B, NT, 2, C)

    # VMEM footprint: double-buffered tiles + packed weights + matmul/shift temps.
    vmem_est = (2 * TL * C * 2 + 2 * 2 * C * 2 + 2 * C * 3 * Dp * 2
                + 2 * TL * D * 4 + 2 * TL * D * out_isz
                + 2 * TL * 3 * Dp * 4)
    vmem_limit = int(min(max(vmem_est + (8 << 20), 32 << 20), 56 << 20))

    out = pl.pallas_call(
        _embed_kernel,
        out_shape=jax.ShapeDtypeStruct((B, L, D), out_dtype),
        grid_spec=pltpu.PrefetchScalarGridSpec(
            num_scalar_prefetch=0,
            # Sequence-tile axis outermost: pe block index is constant across the
            # inner batch steps -> its DMA is skipped (fetched once per tile).
            grid=(NT, B),
            in_specs=[
                pl.BlockSpec((None, TL, C), lambda l, b: (b, l, 0)),         # x tile
                pl.BlockSpec((None, None, 2, C), lambda l, b: (b, l, 0, 0)),  # halo
                pl.BlockSpec((C, 3 * Dp), lambda l, b: (0, 0)),              # packed W
                pl.BlockSpec((TL, D), lambda l, b: (l, 0)),                  # pe tile
            ],
            out_specs=pl.BlockSpec((None, TL, D), lambda l, b: (b, l, 0)),
        ),
        compiler_params=pltpu.CompilerParams(
            dimension_semantics=("parallel", "parallel"),
            vmem_limit_bytes=vmem_limit,
        ),
    )(x_bf, halo, wcat, pe_l)
    # TODO(synk): nn.Dropout(p=0.1) is a training-time op; eval/inference is identity.
    return out


def make_positional_embedding(d_model, max_len=5000):
    position = jnp.arange(max_len, dtype=jnp.float32)[:, None]
    div_term = jnp.exp(
        jnp.arange(0, d_model, 2, dtype=jnp.float32) * -(math.log(10000.0) / d_model))
    pe = jnp.zeros((max_len, d_model), dtype=jnp.float32)
    pe = pe.at[:, 0::2].set(jnp.sin(position * div_term))
    pe = pe.at[:, 1::2].set(jnp.cos(position * div_term))
    return pe


def reference(x, conv_weight, pe):
    # Pure-JAX f32 reference (matches PyTorch Conv1d(k=3, pad=1, circular) + pos emb).
    x_prev = jnp.roll(x, 1, axis=1)
    x_next = jnp.roll(x, -1, axis=1)
    w = jnp.transpose(conv_weight, (2, 1, 0))
    y = (jnp.einsum('blc,cd->bld', x_prev, w[0])
         + jnp.einsum('blc,cd->bld', x, w[1])
         + jnp.einsum('blc,cd->bld', x_next, w[2]))
    return y + pe[None, :x.shape[1]]


if __name__ == "__main__":
    key = jax.random.PRNGKey(0)
    B, L, C, D = 2, 8, 4, 32

    k1, k2, k3, k4 = jax.random.split(key, 4)
    x = jax.random.normal(k1, (B, L, C), dtype=jnp.float32)
    x_mark = jax.random.normal(k2, (B, L, 4), dtype=jnp.float32)  # unused (wo_temp)

    # Kaiming-normal-ish deterministic init for Conv1d weight [d_model, c_in, kernel=3]
    fan_in = C * 3
    conv_weight = jax.random.normal(k3, (D, C, 3), dtype=jnp.float32) * math.sqrt(2.0 / fan_in)

    pe = make_positional_embedding(D)

    # --- single-tile path (whole sequence in one block) ---
    out = data_embedding_wo_temp(x, conv_weight, pe, x_mark)
    out = jax.block_until_ready(out)
    ref = reference(x, conv_weight, pe)
    assert out.shape == (B, L, D)
    # bf16 MXU operands with f32 accumulation -> relaxed tolerance vs. f32 reference.
    assert jnp.allclose(out, ref, atol=5e-2, rtol=5e-2), float(jnp.max(jnp.abs(out - ref)))

    # --- tiled-sequence path (4 tiles of 16 rows; exercises halo patching + pe reuse) ---
    L2 = 64
    x2 = jax.random.normal(k4, (B, L2, C), dtype=jnp.float32)
    out2 = data_embedding_wo_temp(x2, conv_weight, pe, tl_max=16)
    out2 = jax.block_until_ready(out2)
    ref2 = reference(x2, conv_weight, pe)
    assert out2.shape == (B, L2, D)
    assert jnp.allclose(out2, ref2, atol=5e-2, rtol=5e-2), float(jnp.max(jnp.abs(out2 - ref2)))

    # --- bf16 output path (halved output HBM traffic for downstream bf16 consumers) ---
    out3 = data_embedding_wo_temp(x2, conv_weight, pe, tl_max=16, out_dtype=jnp.bfloat16)
    out3 = jax.block_until_ready(out3)
    assert out3.dtype == jnp.bfloat16
    assert jnp.allclose(out3.astype(jnp.float32), ref2, atol=1e-1, rtol=1e-1)

    print("KERNEL_OK")
</pallas_src>

<mosaic_0001>
module attributes {stable_mosaic.version = 11 : i64} {
  func.func @_embed_kernel(%arg0: i32, %arg1: i32, %arg2: memref<1x8x4xbf16, #tpu.memory_space<vmem>>, %arg3: memref<1x1x2x4xbf16, #tpu.memory_space<vmem>>, %arg4: memref<4x384xbf16, #tpu.memory_space<vmem>>, %arg5: memref<8x32xf32, #tpu.memory_space<vmem>>, %arg6: memref<1x8x32xf32, #tpu.memory_space<vmem>>) attributes {dimension_semantics = [#tpu.dimension_semantics<parallel>, #tpu.dimension_semantics<parallel>], iteration_bounds = array<i64: 1, 2>, scalar_prefetch = 0 : i64, scratch_operands = 0 : i64, tpu.core_type = #tpu.core_type<tc>, window_params = [{transform_indices = @transform_0, window_bounds = array<i64: 1, 8, 4>}, {transform_indices = @transform_1, window_bounds = array<i64: 1, 1, 2, 4>}, {pipeline_mode = #tpu.pipeline_mode<synchronous>, transform_indices = @transform_2, window_bounds = array<i64: 4, 384>}, {transform_indices = @transform_3, window_bounds = array<i64: 8, 32>}, {transform_indices = @transform_4, window_bounds = array<i64: 1, 8, 32>}]} {
    %c0 = arith.constant 0 : index
    %c0_0 = arith.constant 0 : index
    %c0_1 = arith.constant 0 : index
    %0 = vector.load %arg2[%c0, %c0_0, %c0_1] : memref<1x8x4xbf16, #tpu.memory_space<vmem>>, vector<1x8x4xbf16>
    %1 = vector.shape_cast %0 : vector<1x8x4xbf16> to vector<8x4xbf16>
    %c0_2 = arith.constant 0 : index
    %c0_3 = arith.constant 0 : index
    %2 = vector.load %arg4[%c0_2, %c0_3] : memref<4x384xbf16, #tpu.memory_space<vmem>>, vector<4x384xbf16>
    %cst = arith.constant dense<0.000000e+00> : vector<8x384xf32>
    %3 = tpu.matmul %1, %2, %cst {dimension_numbers = #tpu.dot_dimension_numbers<[1], [0], [0], [1], [0, 0, 1, 1], [], []>} : vector<8x4xbf16>, vector<4x384xbf16>, vector<8x384xf32> -> vector<8x384xf32>
    %c0_4 = arith.constant 0 : index
    %c0_5 = arith.constant 0 : index
    %c0_6 = arith.constant 0 : index
    %c0_7 = arith.constant 0 : index
    %4 = vector.load %arg3[%c0_4, %c0_5, %c0_6, %c0_7] : memref<1x1x2x4xbf16, #tpu.memory_space<vmem>>, vector<1x1x2x4xbf16>
    %5 = vector.shape_cast %4 : vector<1x1x2x4xbf16> to vector<2x4xbf16>
    %c0_8 = arith.constant 0 : index
    %c0_9 = arith.constant 0 : index
    %6 = vector.load %arg4[%c0_8, %c0_9] : memref<4x384xbf16, #tpu.memory_space<vmem>>, vector<4x384xbf16>
    %cst_10 = arith.constant dense<0.000000e+00> : vector<2x384xf32>
    %7 = tpu.matmul %5, %6, %cst_10 {dimension_numbers = #tpu.dot_dimension_numbers<[1], [0], [0], [1], [0, 0, 1, 1], [], []>} : vector<2x4xbf16>, vector<4x384xbf16>, vector<2x384xf32> -> vector<2x384xf32>
    %8 = vector.extract_strided_slice %3 {offsets = [0, 0], sizes = [8, 128], strides = [1, 1]} : vector<8x384xf32> to vector<8x128xf32>
    %9 = vector.extract_strided_slice %3 {offsets = [0, 128], sizes = [8, 128], strides = [1, 1]} : vector<8x384xf32> to vector<8x128xf32>
    %10 = vector.extract_strided_slice %3 {offsets = [0, 256], sizes = [8, 128], strides = [1, 1]} : vector<8x384xf32> to vector<8x128xf32>
    %c1_i32 = arith.constant 1 : i32
    %11 = tpu.dynamic_rotate %8 by %c1_i32 dim 0 : vector<8x128xf32>, i32 -> vector<8x128xf32>
    %c7_i32 = arith.constant 7 : i32
    %12 = tpu.dynamic_rotate %10 by %c7_i32 dim 0 : vector<8x128xf32>, i32 -> vector<8x128xf32>
    %13 = tpu.iota {dimensions = array<i32: 0>} : vector<8x128xi32>
    %c0_i32 = arith.constant 0 : i32
    %14 = vector.broadcast %c0_i32 : i32 to vector<8x128xi32>
    %15 = arith.cmpi eq, %13, %14 : vector<8x128xi32>
    %16 = vector.extract_strided_slice %7 {offsets = [0, 0], sizes = [1, 128], strides = [1, 1]} : vector<2x384xf32> to vector<1x128xf32>
    %17 = vector.shape_cast %16 : vector<1x128xf32> to vector<1x128xf32>
    %18 = vector.broadcast %17 : vector<1x128xf32> to vector<8x128xf32>
    %19 = arith.select %15, %18, %11 : vector<8x128xi1>, vector<8x128xf32>
    %c7_i32_11 = arith.constant 7 : i32
    %20 = vector.broadcast %c7_i32_11 : i32 to vector<8x128xi32>
    %21 = arith.cmpi eq, %13, %20 : vector<8x128xi32>
    %22 = vector.extract_strided_slice %7 {offsets = [1, 256], sizes = [1, 128], strides = [1, 1]} : vector<2x384xf32> to vector<1x128xf32>
    %23 = vector.shape_cast %22 : vector<1x128xf32> to vector<1x128xf32>
    %24 = vector.broadcast %23 : vector<1x128xf32> to vector<8x128xf32>
    %25 = arith.select %21, %24, %12 : vector<8x128xi1>, vector<8x128xf32>
    %26 = arith.addf %19, %9 : vector<8x128xf32>
    %27 = arith.addf %26, %25 : vector<8x128xf32>
    %28 = vector.extract_strided_slice %27 {offsets = [0, 0], sizes = [8, 32], strides = [1, 1]} : vector<8x128xf32> to vector<8x32xf32>
    %c0_12 = arith.constant 0 : index
    %c0_13 = arith.constant 0 : index
    %29 = vector.load %arg5[%c0_12, %c0_13] : memref<8x32xf32, #tpu.memory_space<vmem>>, vector<8x32xf32>
    %30 = arith.addf %28, %29 : vector<8x32xf32>
    %c0_14 = arith.constant 0 : index
    %c0_15 = arith.constant 0 : index
    %c0_16 = arith.constant 0 : index
    %31 = vector.load %arg6[%c0_14, %c0_15, %c0_16] : memref<1x8x32xf32, #tpu.memory_space<vmem>>, vector<1x8x32xf32>
    %32 = vector.shape_cast %31 : vector<1x8x32xf32> to vector<8x32xf32>
    %33 = vector.shape_cast %30 : vector<8x32xf32> to vector<1x8x32xf32>
    tpu.vector_store %arg6[%c0_14, %c0_15, %c0_16], %33 {strides = array<i32>} : memref<1x8x32xf32, #tpu.memory_space<vmem>>, vector<1x8x32xf32>,
    return
  }
  func.func @transform_0(%arg0: i32, %arg1: i32) -> (i32, i32, i32) {
    %c0_i32 = arith.constant 0 : i32
    %c0_i32_0 = arith.constant 0 : i32
    return %arg1, %arg0, %c0_i32 : i32, i32, i32
  }
  func.func @transform_1(%arg0: i32, %arg1: i32) -> (i32, i32, i32, i32) {
    %c0_i32 = arith.constant 0 : i32
    %c0_i32_0 = arith.constant 0 : i32
    %c0_i32_1 = arith.constant 0 : i32
    return %arg1, %arg0, %c0_i32, %c0_i32_0 : i32, i32, i32, i32
  }
  func.func @transform_2(%arg0: i32, %arg1: i32) -> (i32, i32) {
    %c0_i32 = arith.constant 0 : i32
    %c0_i32_0 = arith.constant 0 : i32
    %c0_i32_1 = arith.constant 0 : i32
    return %c0_i32, %c0_i32_0 : i32, i32
  }
  func.func @transform_3(%arg0: i32, %arg1: i32) -> (i32, i32) {
    %c0_i32 = arith.constant 0 : i32
    %c0_i32_0 = arith.constant 0 : i32
    return %arg0, %c0_i32 : i32, i32
  }
  func.func @transform_4(%arg0: i32, %arg1: i32) -> (i32, i32, i32) {
    %c0_i32 = arith.constant 0 : i32
    %c0_i32_0 = arith.constant 0 : i32
    return %arg1, %arg0, %c0_i32 : i32, i32, i32
  }
}

</mosaic_0001>

<llo_original>
// kernel: tpu_custom_call.1
$region0: #{tpu_custom_call.1}
  #allocation0 [shape = 'u32[]', space=smem, size = 0x4, offset = 0x4, fixed_abs, tag = 'smem constant byte address 0x4 - core index']
  #allocation1 [shape = 'u32[72,128]{1,0:T(1,128)}', space=vmem, size = 0x9000, scoped, tag = 'internal scratch']
  %s0 = inlined_call_operand.vmem [shape: bf16[2,8,4], index: 0, kind: input, shape index: {}]
  %s1 = inlined_call_operand.hbm [shape: bf16[2,1,2,4], index: 1, kind: input, shape index: {}]
  %s2 = inlined_call_operand.vmem [shape: bf16[4,384], index: 2, kind: input, shape index: {}]
  %s3 = inlined_call_operand.vmem [shape: f32[8,32], index: 3, kind: input, shape index: {}]
  %s4 = inlined_call_operand.hbm [shape: f32[2,8,32], index: 4, kind: output, shape index: {}]
  %s5 = sld [smem:[#allocation0]]
  $region53: #{tpu_custom_call.1} parent=0
    _
  %s7 = ssub.s32 1, %s5
  %s8 = scalar_select 0, %s7, %s5
  $region1: #{tpu_custom_call.1} parent=0
    #allocation2 [shape = 'u8[1024]{0}', space=vmem, size = 0x400, scoped, tag = 'input window, operand 1']
    #allocation3 [shape = 's32[2]{0}', space=sflag, size = 0x8, scoped, tag = 'scoped memory for tpu_custom_call.1']
    #allocation4 [shape = 's32[2]{0}', space=sflag, size = 0x8, scoped, tag = 'scoped memory for tpu_custom_call.1']
    #allocation5 [shape = 'u8[8192]{0}', space=vmem, size = 0x2000, scoped, tag = 'output window, operand 0']
    %9 = vsyncpa [#allocation3], 0
    %s10 = scalar_lea.sflag [#allocation3], 1
    %11 = vsyncpa %s10, 0
    %12 = vsyncpa [#allocation4], 0
    %s13 = scalar_lea.sflag [#allocation4], 1
    %14 = vsyncpa %s13, 0
    loop: start=0, step=1, limit=4
    $region2: #{tpu_custom_call.1} parent=1 // loop_pre_header
      _
    $region3: #{tpu_custom_call.1} parent=1 // loop_header
      %s16 = sphi 0, %s20
      %p17 = scmp.ge.s32.totalorder %s16, 4
      %s23 = sphi 0, %s35
      %s24 = sphi 0, %s31
      %s25 = sphi 0, %s23
      %s26 = sphi 0, %s24
      %s27 = sphi 0, %s25
      %s28 = sphi 0, %s26
      %s40 = sphi 0, %s42
      %s43 = sphi 0, %s40
      %s44 = sphi 0, %s43
      %s60 = sphi 0, %s44
      %s68 = sphi 0, %s70
      %s71 = sphi 0, %s68
      %s72 = sphi 0, %s71
      %s88 = sphi 0, %s72
      %s92 = sphi 0, %s92
      %s94 = sphi 0, %s92
      %s95 = sphi 0, %s94
      %s109 = sphi 0, %s95
      %s115 = sphi 0, %s117
      %s118 = sphi 0, %s115
      %s119 = sphi 0, %s118
      %s135 = sphi 0, %s119
      %s143 = sphi 0, %s145
      %s146 = sphi 0, %s143
      %s147 = sphi 0, %s146
      %s163 = sphi 0, %s147
    $region4: #{tpu_custom_call.1} parent=1 // loop_header_branch
      %19 = sbr.rel (%p17) target = $region8
    $region5: #{tpu_custom_call.1} parent=1 // loop_body
      %s21 = ssub.s32 %s16, 1
      %s22 = ssub.s32 %s16, 2
      %s29 = sadd.s32 1, %s24
      %p30 = scmp.ge.s32.totalorder %s29, 2
      %s31 = scalar_select %p30, 0, %s29
      %s32 = sadd.s32 1, %s23
      %s33 = scalar_select %p30, %s32, %s23
      %p34 = scmp.ge.s32.totalorder %s33, 1
      %s35 = scalar_select %p34, 0, %s33
      %s36 = ssub.s32 %s24, %s31
      %s37 = ssub.s32 %s23, %s35
      %s38 = sor.u32 %s36, %s37
      %p39 = scmp.eq.s32.totalorder %s38, 0
      %s41 = sadd.s32 %s40, 1
      %s42 = scalar_select %p39, %s40, %s41
      %p45 = pneg %p39
      %p46 = scmp.eq.s32.totalorder %s16, 1
      %p47 = por %p45, %p46
      %p48 = scmp.ne.s32.totalorder %s40, %s43
      %p49 = scmp.eq.s32.totalorder %s16, 0
      %p50 = por %p48, %p49
      %p51 = scmp.ne.s32.totalorder %s40, %s43
      %p52 = scmp.eq.s32.totalorder %s21, 1
      %p53 = por %p51, %p52
      %p54 = scmp.ne.s32.totalorder %s43, %s44
      %p55 = scmp.eq.s32.totalorder %s21, 0
      %p56 = por %p54, %p55
      %p57 = scmp.ne.s32.totalorder %s43, %s44
      %p58 = scmp.eq.s32.totalorder %s22, 1
      %p59 = por %p57, %p58
      %p61 = scmp.ne.s32.totalorder %s44, %s60
      %p62 = scmp.eq.s32.totalorder %s22, 0
      %p63 = por %p61, %p62
      %s64 = ssub.s32 %s24, %s31
      %s65 = ssub.s32 %s23, %s35
      %s66 = sor.u32 %s64, %s65
      %p67 = scmp.eq.s32.totalorder %s66, 0
      %s69 = sadd.s32 %s68, 1
      %s70 = scalar_select %p67, %s68, %s69
      %p73 = pneg %p67
      %p74 = scmp.eq.s32.totalorder %s16, 1
      %p75 = por %p73, %p74
      %p76 = scmp.ne.s32.totalorder %s68, %s71
      %p77 = scmp.eq.s32.totalorder %s16, 0
      %p78 = por %p76, %p77
      %p79 = scmp.ne.s32.totalorder %s68, %s71
      %p80 = scmp.eq.s32.totalorder %s21, 1
      %p81 = por %p79, %p80
      %p82 = scmp.ne.s32.totalorder %s71, %s72
      %p83 = scmp.eq.s32.totalorder %s21, 0
      %p84 = por %p82, %p83
      %p85 = scmp.ne.s32.totalorder %s71, %s72
      %p86 = scmp.eq.s32.totalorder %s22, 1
      %p87 = por %p85, %p86
      %p89 = scmp.ne.s32.totalorder %s72, %s88
      %p90 = scmp.eq.s32.totalorder %s22, 0
      %p91 = por %p89, %p90
      %s93 = sadd.s32 %s92, 1
      %p96 = scmp.eq.s32.totalorder %s16, 1
      %p97 = scmp.ne.s32.totalorder %s92, %s94
      %p98 = scmp.eq.s32.totalorder %s16, 0
      %p99 = por %p97, %p98
      %p100 = scmp.ne.s32.totalorder %s92, %s94
      %p101 = scmp.eq.s32.totalorder %s21, 1
      %p102 = por %p100, %p101
      %p103 = scmp.ne.s32.totalorder %s94, %s95
      %p104 = scmp.eq.s32.totalorder %s21, 0
      %p105 = por %p103, %p104
      %p106 = scmp.ne.s32.totalorder %s94, %s95
      %p107 = scmp.eq.s32.totalorder %s22, 1
      %p108 = por %p106, %p107
      %p110 = scmp.ne.s32.totalorder %s95, %s109
      %p111 = scmp.eq.s32.totalorder %s22, 0
      %p112 = por %p110, %p111
      %s113 = ssub.s32 %s23, %s35
      %p114 = scmp.eq.s32.totalorder %s113, 0
      %s116 = sadd.s32 %s115, 1
      %s117 = scalar_select %p114, %s115, %s116
      %p120 = pneg %p114
      %p121 = scmp.eq.s32.totalorder %s16, 1
      %p122 = por %p120, %p121
      %p123 = scmp.ne.s32.totalorder %s115, %s118
      %p124 = scmp.eq.s32.totalorder %s16, 0
      %p125 = por %p123, %p124
      %p126 = scmp.ne.s32.totalorder %s115, %s118
      %p127 = scmp.eq.s32.totalorder %s21, 1
      %p128 = por %p126, %p127
      %p129 = scmp.ne.s32.totalorder %s118, %s119
      %p130 = scmp.eq.s32.totalorder %s21, 0
      %p131 = por %p129, %p130
      %p132 = scmp.ne.s32.totalorder %s118, %s119
      %p133 = scmp.eq.s32.totalorder %s22, 1
      %p134 = por %p132, %p133
      %p136 = scmp.ne.s32.totalorder %s119, %s135
      %p137 = scmp.eq.s32.totalorder %s22, 0
      %p138 = por %p136, %p137
      %s139 = ssub.s32 %s24, %s31
      %s140 = ssub.s32 %s23, %s35
      %s141 = sor.u32 %s139, %s140
      %p142 = scmp.eq.s32.totalorder %s141, 0
      %s144 = sadd.s32 %s143, 1
      %s145 = scalar_select %p142, %s143, %s144
      %p148 = pneg %p142
      %p149 = scmp.eq.s32.totalorder %s16, 1
      %p150 = por %p148, %p149
      %p151 = scmp.ne.s32.totalorder %s143, %s146
      %p152 = scmp.eq.s32.totalorder %s16, 0
      %p153 = por %p151, %p152
      %p154 = scmp.ne.s32.totalorder %s143, %s146
      %p155 = scmp.eq.s32.totalorder %s21, 1
      %p156 = por %p154, %p155
      %p157 = scmp.ne.s32.totalorder %s146, %s147
      %p158 = scmp.eq.s32.totalorder %s21, 0
      %p159 = por %p157, %p158
      %p160 = scmp.ne.s32.totalorder %s146, %s147
      %p161 = scmp.eq.s32.totalorder %s22, 1
      %p162 = por %p160, %p161
      %p164 = scmp.ne.s32.totalorder %s147, %s163
      %p165 = scmp.eq.s32.totalorder %s22, 0
      %p166 = por %p164, %p165
      %p167 = scmp.le.s32.totalorder 1, %s16
      %p168 = scmp.lt.s32.totalorder %s16, 3
      %p169 = pnand %p167, %p168
      %p170 = pneg %p169
      // Predicated region
      $region9: #{tpu_custom_call.1} parent=5 // pred_check
        _
      $region10: #{tpu_custom_call.1} parent=5 // pred_check_branch
        %172 = sbr.rel (%p169) target = $region12
      $region11: #{tpu_custom_call.1} parent=5 // pred_region
        %s173 = ssub.s32 %s16, 1
        // Predicated region
        $region13: #{tpu_custom_call.1} parent=11 // pred_check
          %p174 = pneg %p105
        $region14: #{tpu_custom_call.1} parent=11 // pred_check_branch
          %176 = sbr.rel (%p174) target = $region16
        $region15: #{tpu_custom_call.1} parent=11 // pred_region
          _
        $region16: #{tpu_custom_call.1} parent=11 // pred_fallthru
          _
        // Predicated region
        $region17: #{tpu_custom_call.1} parent=11 // pred_check
          %p177 = pneg %p131
        $region18: #{tpu_custom_call.1} parent=11 // pred_check_branch
          %179 = sbr.rel (%p177) target = $region20
        $region19: #{tpu_custom_call.1} parent=11 // pred_region
          %p180 = scmp.lt.s32.totalorder %s25, 0
          %s181 = scalar_select %p180, %s25, 0
          %s182 = smul.addr %s181, 8
          %s183 = scalar_lea.vmem %s3, %s182
        $region20: #{tpu_custom_call.1} parent=11 // pred_fallthru
          _
      $region12: #{tpu_custom_call.1} parent=5 // pred_fallthru
        _
      %p184 = scmp.lt.s32.totalorder %s16, 2
      // Predicated region
      $region21: #{tpu_custom_call.1} parent=5 // pred_check
        %p185 = pneg %p184
      $region22: #{tpu_custom_call.1} parent=5 // pred_check_branch
        %187 = sbr.rel (%p185) target = $region24
      $region23: #{tpu_custom_call.1} parent=5 // pred_region
        // Predicated region
        $region25: #{tpu_custom_call.1} parent=23 // pred_check
          %p188 = pneg %p50
        $region26: #{tpu_custom_call.1} parent=23 // pred_check_branch
          %190 = sbr.rel (%p188) target = $region28
        $region27: #{tpu_custom_call.1} parent=23 // pred_region
          %p191 = scmp.lt.s32.totalorder %s24, 1
          %s192 = scalar_select %p191, %s24, 1
          %p193 = scmp.lt.s32.totalorder %s23, 0
          %s194 = scalar_select %p193, %s23, 0
          %s195 = sadd.s32 %s194, %s192
          %s196 = smul.addr %s195, 4
          %s197 = scalar_lea.vmem %s0, %s196
        $region28: #{tpu_custom_call.1} parent=23 // pred_fallthru
          _
        // Predicated region
        $region29: #{tpu_custom_call.1} parent=23 // pred_check
          %p198 = pneg %p78
        $region30: #{tpu_custom_call.1} parent=23 // pred_check_branch
          %200 = sbr.rel (%p198) target = $region32
        $region31: #{tpu_custom_call.1} parent=23 // pred_region
          %s201 = sand.u32 %s68, 1
          %s202 = scalar_lea.sflag [#allocation3], %s201
          %s203 = sand.u32 %s68, 1
          %s204 = scalar_lea.vmem [#allocation2], %s203
          %206 = vsyncadd %s202, 0
          %s207 = sadd.s32 %s23, %s24
          %s208 = scalar_lea.hbm %s1, %s207
          %s210 = sshll.u32 %s208, 4
          %s211 = int_to_ptr.hbm [resolvable:$true] %s210
          %s212 = sshll.u32 %s204, 4
          %s213 = int_to_ptr.vmem [resolvable:$true] %s212
          %215 = dma.hbm_to_vmem [thread:$0]  %s211, 16, %s213, %s202
        $region32: #{tpu_custom_call.1} parent=23 // pred_fallthru
          _
      $region24: #{tpu_custom_call.1} parent=5 // pred_fallthru
        _
      %p216 = scmp.le.s32.totalorder 1, %s16
      %p217 = scmp.lt.s32.totalorder %s16, 3
      %p218 = pnand %p216, %p217
      %p219 = pneg %p218
      // Predicated region
      $region33: #{tpu_custom_call.1} parent=5 // pred_check
        _
      $region34: #{tpu_custom_call.1} parent=5 // pred_check_branch
        %221 = sbr.rel (%p218) target = $region36
      $region35: #{tpu_custom_call.1} parent=5 // pred_region
        %s222 = ssub.s32 %s16, 1
        %s223 = sand.u32 %s71, 1
        %s224 = scalar_lea.sflag [#allocation3], %s223
        %s225 = sand.u32 %s71, 1
        %s226 = scalar_lea.vmem [#allocation2], %s225
        // Predicated region
        $region37: #{tpu_custom_call.1} parent=35 // pred_check
          %p227 = pneg %p84
        $region38: #{tpu_custom_call.1} parent=35 // pred_check_branch
          %229 = sbr.rel (%p227) target = $region40
        $region39: #{tpu_custom_call.1} parent=35 // pred_region
          %231 = dma.done %s224, 16
        $region40: #{tpu_custom_call.1} parent=35 // pred_fallthru
          _
        %p232 = scmp.lt.s32.totalorder %s26, 1
        %s233 = scalar_select %p232, %s26, 1
        %p234 = scmp.lt.s32.totalorder %s25, 0
        %s235 = scalar_select %p234, %s25, 0
        %s236 = sadd.s32 %s235, %s233
        %s237 = smul.addr %s236, 4
        %s238 = scalar_lea.vmem %s0, %s237
        %p239 = pneg %p56
        %p240 = pneg %p53
        %s241 = sand.u32 %s71, 1
        %s242 = scalar_lea.sflag [#allocation3], %s241
        %s243 = sand.u32 %s71, 1
        %s244 = scalar_lea.vmem [#allocation2], %s243
        %p245 = pneg %p84
        %p246 = pneg %p81
        %p247 = pneg %p105
        %p248 = pneg %p102
        %p249 = scmp.lt.s32.totalorder %s25, 0
        %s250 = scalar_select %p249, %s25, 0
        %s251 = smul.addr %s250, 8
        %s252 = scalar_lea.vmem %s3, %s251
        %p253 = pneg %p131
        %p254 = pneg %p128
        %p255 = pneg %p159
        %p256 = pneg %p156
        %s257 = sand.u32 %s146, 1
        %s258 = scalar_lea.sflag [#allocation4], %s257
        %s259 = sand.u32 %s146, 1
        %s260 = smul.addr %s259, 8
        %s261 = scalar_lea.vmem [#allocation5], %s260
        %p262 = scmp.lt.s32.totalorder %s26, 1
        %s263 = scalar_select %p262, %s26, 1
        %p264 = scmp.lt.s32.totalorder %s25, 0
        %s265 = scalar_select %p264, %s25, 0
        %s266 = sadd.s32 %s265, %s263
        %s267 = smul.addr %s266, 4
        %s268 = scalar_lea.vmem %s0, %s267
        %p269 = scmp.lt.s32.totalorder %s25, 0
        %s270 = scalar_select %p269, %s25, 0
        %s271 = smul.addr %s270, 8
        %s272 = scalar_lea.vmem %s3, %s271
        %v274 = vld [vmem:[%s268] sm:$0xf]
        %v275 = vld [vmem:[%s2] sm:$0x3f]
        %277 = vst [vmem:[#allocation1] ss:$4 sm:$0xff] %v275
        %v278 = vld.sshfl [vmem:[#allocation1] sm:$0xff pattern:$0x73625140]
        %v279 = vld.sshfl [vmem:[#allocation1 + $0x8] sm:$0xff pattern:$0x73625140]
        %v280 = vld.sshfl [vmem:[#allocation1 + $0x10] sm:$0xff pattern:$0x73625140]
        %vm281 = vcmask 31744
        %v283 = vsel %vm281, %v274, 0
        %vm285 = vcmask 1041408
        %v286 = vsel %vm285, %v278, 0
        %v288 = vsel %vm285, %v279, 0
        %v290 = vsel %vm285, %v280, 0
        %292 = vmatpush.bf16.msra.mxu0 0
        %293 = vmatpush.bf16.msra.mxu0 0
        %294 = vmatpush.bf16.msra.mxu0 0
        %295 = vmatpush.bf16.msra.mxu0 0
        %296 = vmatpush.bf16.msra.mxu0 0
        %297 = vmatpush.bf16.msra.mxu0 0
        %298 = vmatpush.bf16.msra.mxu0 0
        %299 = vmatpush.bf16.msra.mxu0 %v286
        %300 = vmatmul.bf16.gmra.mxu0 %v283
        %v301 = vpop.f32.mrf.mxu0
        %v302 = vadd.f32 0.0, %v301
        %v303 = vpop.f32.mrf.mxu0
        %304 = vdwg.mxu0
        %305 = vmatpush.bf16.msra.mxu0 0
        %306 = vmatpush.bf16.msra.mxu0 0
        %307 = vmatpush.bf16.msra.mxu0 0
        %308 = vmatpush.bf16.msra.mxu0 0
        %309 = vmatpush.bf16.msra.mxu0 0
        %310 = vmatpush.bf16.msra.mxu0 0
        %311 = vmatpush.bf16.msra.mxu0 0
        %312 = vmatpush.bf16.msra.mxu0 %v288
        %313 = vmatmul.bf16.gmra.mxu0 %v283
        %v314 = vpop.f32.mrf.mxu0
        %v315 = vadd.f32 0.0, %v314
        %v316 = vpop.f32.mrf.mxu0
        %317 = vdwg.mxu0
        %318 = vmatpush.bf16.msra.mxu0 0
        %319 = vmatpush.bf16.msra.mxu0 0
        %320 = vmatpush.bf16.msra.mxu0 0
        %321 = vmatpush.bf16.msra.mxu0 0
        %322 = vmatpush.bf16.msra.mxu0 0
        %323 = vmatpush.bf16.msra.mxu0 0
        %324 = vmatpush.bf16.msra.mxu0 0
        %325 = vmatpush.bf16.msra.mxu0 %v290
        %326 = vmatmul.bf16.gmra.mxu0 %v283
        %v327 = vpop.f32.mrf.mxu0
        %v328 = vadd.f32 0.0, %v327
        %v329 = vpop.f32.mrf.mxu0
        %330 = vdwg.mxu0
        %v331 = vld [vmem:[%s226] sm:$0x1]
        %332 = vst [vmem:[#allocation1] ss:$4 sm:$0xff] %v275
        %v333 = vld.sshfl [vmem:[#allocation1] sm:$0xff pattern:$0x73625140]
        %v334 = vld.sshfl [vmem:[#allocation1 + $0x10] sm:$0xff pattern:$0x73625140]
        %v336 = vsel %vm281, %v331, 0
        %v338 = vsel %vm285, %v333, 0
        %v340 = vsel %vm285, %v334, 0
        %342 = vmatpush.bf16.msra.mxu0 0
        %343 = vmatpush.bf16.msra.mxu0 0
        %344 = vmatpush.bf16.msra.mxu0 0
        %345 = vmatpush.bf16.msra.mxu0 0
        %346 = vmatpush.bf16.msra.mxu0 0
        %347 = vmatpush.bf16.msra.mxu0 0
        %348 = vmatpush.bf16.msra.mxu0 0
        %349 = vmatpush.bf16.msra.mxu0 %v338
        %350 = vmatmul.bf16.gmra.mxu0 %v336
        %v351 = vpop.f32.mrf.mxu0
        %v352 = vadd.f32 0.0, %v351
        %v353 = vpop.f32.mrf.mxu0
        %354 = vdwg.mxu0
        %355 = vmatpush.bf16.msra.mxu0 0
        %356 = vmatpush.bf16.msra.mxu0 0
        %357 = vmatpush.bf16.msra.mxu0 0
        %358 = vmatpush.bf16.msra.mxu0 0
        %359 = vmatpush.bf16.msra.mxu0 0
        %360 = vmatpush.bf16.msra.mxu0 0
        %361 = vmatpush.bf16.msra.mxu0 0
        %362 = vmatpush.bf16.msra.mxu0 %v340
        %363 = vmatmul.bf16.gmra.mxu0 %v336
        %v364 = vpop.f32.mrf.mxu0
        %v365 = vadd.f32 0.0, %v364
        %v366 = vpop.f32.mrf.mxu0
        %367 = vdwg.mxu0
        %v368 = vrot.slane %v302, 7
        %v369 = vrot.slane %v328, 1
        %v370 = vlaneseq
        %v371 = vshrl.u32 %v370, 7
        %vm372 = vcmp.eq.s32.totalorder %v371, 0
        %v373 = vperm.slane %v352, 0
        %v374 = vsel %vm372, %v373, %v368
        %vm375 = vcmp.eq.s32.totalorder %v371, 7
        %v376 = vperm.slane %v365, 1
        %v377 = vsel %vm375, %v376, %v369
        %v378 = vadd.f32 %v374, %v315
        %v379 = vadd.f32 %v378, %v377
        %v380 = vld [vmem:[%s272] sm:$0xff]
        %v381 = vadd.f32 %v379, %v380
        %vm382 = vcmask 261120
        %383 = vst.msk [vmem:[%s261] sm:$0xff] %vm382, %v381
        %s384 = sand.u32 %s146, 1
        %s385 = scalar_lea.sflag [#allocation4], %s384
        %s386 = sand.u32 %s146, 1
        %s387 = smul.addr %s386, 8
        %s388 = scalar_lea.vmem [#allocation5], %s387
        // Predicated region
        $region41: #{tpu_custom_call.1} parent=35 // pred_check
          %p389 = pneg %p156
        $region42: #{tpu_custom_call.1} parent=35 // pred_check_branch
          %391 = sbr.rel (%p389) target = $region44
        $region43: #{tpu_custom_call.1} parent=35 // pred_region
          %393 = vsyncadd %s385, 0
          %s394 = sadd.s32 %s25, %s26
          %s395 = smul.addr %s394, 8
          %s396 = scalar_lea.hbm %s4, %s395
          %s398 = sshll.u32 %s388, 4
          %s399 = int_to_ptr.vmem [resolvable:$true] %s398
          %s400 = sshll.u32 %s396, 4
          %s401 = int_to_ptr.hbm [resolvable:$true] %s400
          %403 = dma.vmem_to_hbm [thread:$0]  %s399, 128, %s401, %s385
        $region44: #{tpu_custom_call.1} parent=35 // pred_fallthru
          _
      $region36: #{tpu_custom_call.1} parent=5 // pred_fallthru
        _
      %p404 = scmp.le.s32.totalorder 2, %s16
      // Predicated region
      $region45: #{tpu_custom_call.1} parent=5 // pred_check
        %p405 = pneg %p404
      $region46: #{tpu_custom_call.1} parent=5 // pred_check_branch
        %407 = sbr.rel (%p405) target = $region48
      $region47: #{tpu_custom_call.1} parent=5 // pred_region
        %s408 = ssub.s32 %s16, 2
        // Predicated region
        $region49: #{tpu_custom_call.1} parent=47 // pred_check
          %p409 = pneg %p162
        $region50: #{tpu_custom_call.1} parent=47 // pred_check_branch
          %411 = sbr.rel (%p409) target = $region52
        $region51: #{tpu_custom_call.1} parent=47 // pred_region
          %s412 = sand.u32 %s147, 1
          %s413 = scalar_lea.sflag [#allocation4], %s412
          %s414 = sand.u32 %s147, 1
          %s415 = smul.addr %s414, 8
          %s416 = scalar_lea.vmem [#allocation5], %s415
          %418 = dma.done %s413, 128
        $region52: #{tpu_custom_call.1} parent=47 // pred_fallthru
          _
      $region48: #{tpu_custom_call.1} parent=5 // pred_fallthru
        _
    $region6: #{tpu_custom_call.1} parent=1 // loop_footer
      %s20 = sadd.s32 1, %s16
    $region7: #{tpu_custom_call.1} parent=1 // loop_footer_branch
      %15 = sbr.rel target = $region3
    $region8: #{tpu_custom_call.1} parent=1 // loop_exit
      _
    %419 = vsyncpa [#allocation3], 1
    %s420 = scalar_lea.sflag [#allocation3], 1
    %421 = vsyncpa %s420, 1
    %422 = vsyncpa [#allocation4], 1
    %s423 = scalar_lea.sflag [#allocation4], 1
    %424 = vsyncpa %s423, 1

</llo_original>
